<compile_context>
chip_gen: v5e
topology: v5e:2x2
jax: 0.10.0
libtpu: 0.0.40
codegen_flags: <defaults>
</compile_context>

<pallas_src>
import functools

import jax
import jax.numpy as jnp
from jax.experimental import pallas as pl
from jax.experimental.pallas import tpu as pltpu

NEG_SLOPE = 0.01  # default negative_slope of nn.LeakyReLU


def _mlp_kernel(x_ref, w0_ref, b0_ref, wh_ref, bh_ref, wl_ref, bl_ref, o_ref):
    """Full MLP forward for one batch tile, entirely in VMEM.

    x_ref : (F, batch_tile)            activations, batch on the lane axis
    w0_ref: (neurons, F), b0_ref: (neurons, 1)
    wh_ref: (L-2, neurons, neurons), bh_ref: (L-2, neurons, 1)   stacked hidden layers
    wl_ref: (1, neurons), bl_ref: (1, 1)
    o_ref : (1, batch_tile)            lane-dense output block
    """
    # Layer 0: Linear -> (Dropout = identity in eval) -> LeakyReLU
    h = jnp.dot(w0_ref[...], x_ref[...],
                preferred_element_type=jnp.float32) + b0_ref[...]
    h = jnp.where(h > 0, h, NEG_SLOPE * h)

    # Hidden layers 1 .. L-2 (static unrolled loop -> best LLO interleave)
    n_hidden = wh_ref.shape[0]
    for l in range(n_hidden):
        h = jnp.dot(wh_ref[l], h,
                    preferred_element_type=jnp.float32) + bh_ref[l]
        h = jnp.where(h > 0, h, NEG_SLOPE * h)

    # Final Linear(neurons, 1) + Sigmoid (no dropout / LeakyReLU on the last layer)
    h = jnp.dot(wl_ref[...], h,
                preferred_element_type=jnp.float32) + bl_ref[...]
    o_ref[...] = jax.nn.sigmoid(h).astype(o_ref.dtype)


def make_params(key, amount_features, layers=6, neurons=16, dtype=jnp.float32):
    """Parameter init mirroring nn.Linear (uniform +-1/sqrt(fan_in)), torch (out,in) layout.

    Returns (w0, b0, wh_stack, bh_stack, w_last, b_last) with
      w0: (neurons, F),                 b0: (neurons, 1)
      wh: (layers-2, neurons, neurons), bh: (layers-2, neurons, 1)
      wl: (1, neurons),                 bl: (1, 1)
    """
    dims = []
    for i in range(layers):
        if i == 0:
            dims.append((amount_features, neurons))       # (fan_in, fan_out)
        elif i == layers - 1:
            dims.append((neurons, 1))
        else:
            dims.append((neurons, neurons))

    keys = jax.random.split(key, 2 * layers)
    ws, bs = [], []
    for i, (din, dout) in enumerate(dims):
        bound = 1.0 / float(din) ** 0.5
        w = jax.random.uniform(keys[2 * i], (dout, din), dtype=dtype,
                               minval=-bound, maxval=bound)
        b = jax.random.uniform(keys[2 * i + 1], (dout, 1), dtype=dtype,
                               minval=-bound, maxval=bound)
        ws.append(w)
        bs.append(b)

    w0, b0 = ws[0], bs[0]
    wh = jnp.stack(ws[1:layers - 1], axis=0)
    bh = jnp.stack(bs[1:layers - 1], axis=0)
    wl, bl = ws[layers - 1], bs[layers - 1]
    return (w0, b0, wh, bh, wl, bl)


@functools.partial(jax.jit, static_argnames=("batch_tile",))
def net_forward(x, params, batch_tile=512):
    """Runs the whole MLP inside one Pallas kernel, tiled over the batch axis."""
    B, F = x.shape
    w0, b0, wh, bh, wl, bl = params

    assert batch_tile % 128 == 0, "batch_tile must be a multiple of 128 (lane width)"

    # Pad batch to a multiple of batch_tile (ragged batches supported) and transpose so
    # the batch dimension lands on the 128-lane axis.
    B_pad = ((B + batch_tile - 1) // batch_tile) * batch_tile
    x_t = jnp.zeros((F, B_pad), x.dtype).at[:, :B].set(x.T)

    grid = (B_pad // batch_tile,)

    in_specs = [
        pl.BlockSpec((F, batch_tile), lambda i: (0, i)),            # activations
        pl.BlockSpec(w0.shape, lambda i: (0, 0)),                   # w0  (VMEM-resident)
        pl.BlockSpec(b0.shape, lambda i: (0, 0)),                   # b0
        pl.BlockSpec(wh.shape, lambda i: (0, 0, 0)),                # stacked hidden W
        pl.BlockSpec(bh.shape, lambda i: (0, 0, 0)),                # stacked hidden b
        pl.BlockSpec(wl.shape, lambda i: (0, 0)),                   # final W
        pl.BlockSpec(bl.shape, lambda i: (0, 0)),                   # final b
    ]
    out_spec = pl.BlockSpec((1, batch_tile), lambda i: (0, i))      # lane-dense output

    out_t = pl.pallas_call(
        _mlp_kernel,
        out_shape=jax.ShapeDtypeStruct((1, B_pad), x.dtype),
        grid=grid,
        in_specs=in_specs,
        out_specs=out_spec,
        compiler_params=pltpu.CompilerParams(
            dimension_semantics=("parallel",)),
    )(x_t, w0, b0, wh, bh, wl, bl)

    # Slice off padding and return in the PyTorch (B, 1) convention.
    return out_t[:, :B].T


def net_forward_ref(x, params):
    """Pure-JAX reference for correctness checking (row-major, like torch)."""
    w0, b0, wh, bh, wl, bl = params
    h = x @ w0.T + b0.T
    h = jnp.where(h > 0, h, NEG_SLOPE * h)
    for l in range(wh.shape[0]):
        h = h @ wh[l].T + bh[l].T
        h = jnp.where(h > 0, h, NEG_SLOPE * h)
    h = h @ wl.T + bl.T
    return jax.nn.sigmoid(h)


if __name__ == "__main__":
    amount_features = 16
    batch = 256           # 2 grid steps at batch_tile=128 -> exercises the pipeline
    batch_tile = 128

    key = jax.random.PRNGKey(0)
    k_x, k_p = jax.random.split(key)

    x = jax.random.normal(k_x, (batch, amount_features), dtype=jnp.float32)
    params = make_params(k_p, amount_features, layers=6, neurons=16)

    out = jax.block_until_ready(net_forward(x, params, batch_tile=batch_tile))
    ref = net_forward_ref(x, params)

    assert out.shape == (batch, 1), out.shape
    assert jnp.allclose(out, ref, atol=1e-5, rtol=1e-5), (
        float(jnp.max(jnp.abs(out - ref))))

    # Also exercise a ragged (non-multiple-of-tile) batch.
    x_small = x[:100]
    out_small = jax.block_until_ready(net_forward(x_small, params,
                                                  batch_tile=batch_tile))
    assert out_small.shape == (100, 1)
    assert jnp.allclose(out_small, ref[:100], atol=1e-5, rtol=1e-5)

    print("KERNEL_OK")
</pallas_src>

<mosaic_0001>
module attributes {stable_mosaic.version = 11 : i64} {
  func.func @_mlp_kernel(%arg0: i32, %arg1: memref<16x128xf32, #tpu.memory_space<vmem>>, %arg2: memref<16x16xf32, #tpu.memory_space<vmem>>, %arg3: memref<16x1xf32, #tpu.memory_space<vmem>>, %arg4: memref<4x16x16xf32, #tpu.memory_space<vmem>>, %arg5: memref<4x16x1xf32, #tpu.memory_space<vmem>>, %arg6: memref<1x16xf32, #tpu.memory_space<vmem>>, %arg7: memref<1x1xf32, #tpu.memory_space<vmem>>, %arg8: memref<1x128xf32, #tpu.memory_space<vmem>>) attributes {dimension_semantics = [#tpu.dimension_semantics<parallel>], iteration_bounds = array<i64: 2>, scalar_prefetch = 0 : i64, scratch_operands = 0 : i64, tpu.core_type = #tpu.core_type<tc>, window_params = [{transform_indices = @transform_0, window_bounds = array<i64: 16, 128>}, {pipeline_mode = #tpu.pipeline_mode<synchronous>, transform_indices = @transform_1, window_bounds = array<i64: 16, 16>}, {pipeline_mode = #tpu.pipeline_mode<synchronous>, transform_indices = @transform_2, window_bounds = array<i64: 16, 1>}, {pipeline_mode = #tpu.pipeline_mode<synchronous>, transform_indices = @transform_3, window_bounds = array<i64: 4, 16, 16>}, {pipeline_mode = #tpu.pipeline_mode<synchronous>, transform_indices = @transform_4, window_bounds = array<i64: 4, 16, 1>}, {pipeline_mode = #tpu.pipeline_mode<synchronous>, transform_indices = @transform_5, window_bounds = array<i64: 1, 16>}, {pipeline_mode = #tpu.pipeline_mode<synchronous>, transform_indices = @transform_6, window_bounds = array<i64: 1, 1>}, {transform_indices = @transform_7, window_bounds = array<i64: 1, 128>}]} {
    %c0 = arith.constant 0 : index
    %c0_0 = arith.constant 0 : index
    %0 = vector.load %arg2[%c0, %c0_0] : memref<16x16xf32, #tpu.memory_space<vmem>>, vector<16x16xf32>
    %c0_1 = arith.constant 0 : index
    %c0_2 = arith.constant 0 : index
    %1 = vector.load %arg1[%c0_1, %c0_2] : memref<16x128xf32, #tpu.memory_space<vmem>>, vector<16x128xf32>
    %cst = arith.constant dense<0.000000e+00> : vector<16x128xf32>
    %2 = tpu.matmul %0, %1, %cst {dimension_numbers = #tpu.dot_dimension_numbers<[1], [0], [0], [1], [0, 0, 1, 1], [], []>} : vector<16x16xf32>, vector<16x128xf32>, vector<16x128xf32> -> vector<16x128xf32>
    %c0_3 = arith.constant 0 : index
    %c0_4 = arith.constant 0 : index
    %3 = vector.load %arg3[%c0_3, %c0_4] : memref<16x1xf32, #tpu.memory_space<vmem>>, vector<16x1xf32>
    %4 = vector.broadcast %3 : vector<16x1xf32> to vector<16x128xf32>
    %5 = arith.addf %2, %4 : vector<16x128xf32>
    %cst_5 = arith.constant 0.000000e+00 : f32
    %6 = vector.broadcast %cst_5 : f32 to vector<16x128xf32>
    %7 = arith.cmpf ogt, %5, %6 : vector<16x128xf32>
    %cst_6 = arith.constant 0.00999999977 : f32
    %8 = vector.broadcast %cst_6 : f32 to vector<16x128xf32>
    %9 = arith.mulf %8, %5 : vector<16x128xf32>
    %10 = arith.select %7, %5, %9 : vector<16x128xi1>, vector<16x128xf32>
    %c0_7 = arith.constant 0 : index
    %c0_8 = arith.constant 0 : index
    %c0_9 = arith.constant 0 : index
    %11 = vector.load %arg4[%c0_7, %c0_8, %c0_9] : memref<4x16x16xf32, #tpu.memory_space<vmem>>, vector<1x16x16xf32>
    %12 = vector.shape_cast %11 : vector<1x16x16xf32> to vector<16x16xf32>
    %cst_10 = arith.constant dense<0.000000e+00> : vector<16x128xf32>
    %13 = tpu.matmul %12, %10, %cst_10 {dimension_numbers = #tpu.dot_dimension_numbers<[1], [0], [0], [1], [0, 0, 1, 1], [], []>} : vector<16x16xf32>, vector<16x128xf32>, vector<16x128xf32> -> vector<16x128xf32>
    %c0_11 = arith.constant 0 : index
    %c0_12 = arith.constant 0 : index
    %c0_13 = arith.constant 0 : index
    %14 = vector.load %arg5[%c0_11, %c0_12, %c0_13] : memref<4x16x1xf32, #tpu.memory_space<vmem>>, vector<1x16x1xf32>
    %15 = vector.shape_cast %14 : vector<1x16x1xf32> to vector<16x1xf32>
    %16 = vector.broadcast %15 : vector<16x1xf32> to vector<16x128xf32>
    %17 = arith.addf %13, %16 : vector<16x128xf32>
    %cst_14 = arith.constant 0.000000e+00 : f32
    %18 = vector.broadcast %cst_14 : f32 to vector<16x128xf32>
    %19 = arith.cmpf ogt, %17, %18 : vector<16x128xf32>
    %cst_15 = arith.constant 0.00999999977 : f32
    %20 = vector.broadcast %cst_15 : f32 to vector<16x128xf32>
    %21 = arith.mulf %20, %17 : vector<16x128xf32>
    %22 = arith.select %19, %17, %21 : vector<16x128xi1>, vector<16x128xf32>
    %c1 = arith.constant 1 : index
    %c0_16 = arith.constant 0 : index
    %c0_17 = arith.constant 0 : index
    %23 = vector.load %arg4[%c1, %c0_16, %c0_17] : memref<4x16x16xf32, #tpu.memory_space<vmem>>, vector<1x16x16xf32>
    %24 = vector.shape_cast %23 : vector<1x16x16xf32> to vector<16x16xf32>
    %cst_18 = arith.constant dense<0.000000e+00> : vector<16x128xf32>
    %25 = tpu.matmul %24, %22, %cst_18 {dimension_numbers = #tpu.dot_dimension_numbers<[1], [0], [0], [1], [0, 0, 1, 1], [], []>} : vector<16x16xf32>, vector<16x128xf32>, vector<16x128xf32> -> vector<16x128xf32>
    %c1_19 = arith.constant 1 : index
    %c0_20 = arith.constant 0 : index
    %c0_21 = arith.constant 0 : index
    %26 = vector.load %arg5[%c1_19, %c0_20, %c0_21] : memref<4x16x1xf32, #tpu.memory_space<vmem>>, vector<1x16x1xf32>
    %27 = vector.shape_cast %26 : vector<1x16x1xf32> to vector<16x1xf32>
    %28 = vector.broadcast %27 : vector<16x1xf32> to vector<16x128xf32>
    %29 = arith.addf %25, %28 : vector<16x128xf32>
    %cst_22 = arith.constant 0.000000e+00 : f32
    %30 = vector.broadcast %cst_22 : f32 to vector<16x128xf32>
    %31 = arith.cmpf ogt, %29, %30 : vector<16x128xf32>
    %cst_23 = arith.constant 0.00999999977 : f32
    %32 = vector.broadcast %cst_23 : f32 to vector<16x128xf32>
    %33 = arith.mulf %32, %29 : vector<16x128xf32>
    %34 = arith.select %31, %29, %33 : vector<16x128xi1>, vector<16x128xf32>
    %c2 = arith.constant 2 : index
    %c0_24 = arith.constant 0 : index
    %c0_25 = arith.constant 0 : index
    %35 = vector.load %arg4[%c2, %c0_24, %c0_25] : memref<4x16x16xf32, #tpu.memory_space<vmem>>, vector<1x16x16xf32>
    %36 = vector.shape_cast %35 : vector<1x16x16xf32> to vector<16x16xf32>
    %cst_26 = arith.constant dense<0.000000e+00> : vector<16x128xf32>
    %37 = tpu.matmul %36, %34, %cst_26 {dimension_numbers = #tpu.dot_dimension_numbers<[1], [0], [0], [1], [0, 0, 1, 1], [], []>} : vector<16x16xf32>, vector<16x128xf32>, vector<16x128xf32> -> vector<16x128xf32>
    %c2_27 = arith.constant 2 : index
    %c0_28 = arith.constant 0 : index
    %c0_29 = arith.constant 0 : index
    %38 = vector.load %arg5[%c2_27, %c0_28, %c0_29] : memref<4x16x1xf32, #tpu.memory_space<vmem>>, vector<1x16x1xf32>
    %39 = vector.shape_cast %38 : vector<1x16x1xf32> to vector<16x1xf32>
    %40 = vector.broadcast %39 : vector<16x1xf32> to vector<16x128xf32>
    %41 = arith.addf %37, %40 : vector<16x128xf32>
    %cst_30 = arith.constant 0.000000e+00 : f32
    %42 = vector.broadcast %cst_30 : f32 to vector<16x128xf32>
    %43 = arith.cmpf ogt, %41, %42 : vector<16x128xf32>
    %cst_31 = arith.constant 0.00999999977 : f32
    %44 = vector.broadcast %cst_31 : f32 to vector<16x128xf32>
    %45 = arith.mulf %44, %41 : vector<16x128xf32>
    %46 = arith.select %43, %41, %45 : vector<16x128xi1>, vector<16x128xf32>
    %c3 = arith.constant 3 : index
    %c0_32 = arith.constant 0 : index
    %c0_33 = arith.constant 0 : index
    %47 = vector.load %arg4[%c3, %c0_32, %c0_33] : memref<4x16x16xf32, #tpu.memory_space<vmem>>, vector<1x16x16xf32>
    %48 = vector.shape_cast %47 : vector<1x16x16xf32> to vector<16x16xf32>
    %cst_34 = arith.constant dense<0.000000e+00> : vector<16x128xf32>
    %49 = tpu.matmul %48, %46, %cst_34 {dimension_numbers = #tpu.dot_dimension_numbers<[1], [0], [0], [1], [0, 0, 1, 1], [], []>} : vector<16x16xf32>, vector<16x128xf32>, vector<16x128xf32> -> vector<16x128xf32>
    %c3_35 = arith.constant 3 : index
    %c0_36 = arith.constant 0 : index
    %c0_37 = arith.constant 0 : index
    %50 = vector.load %arg5[%c3_35, %c0_36, %c0_37] : memref<4x16x1xf32, #tpu.memory_space<vmem>>, vector<1x16x1xf32>
    %51 = vector.shape_cast %50 : vector<1x16x1xf32> to vector<16x1xf32>
    %52 = vector.broadcast %51 : vector<16x1xf32> to vector<16x128xf32>
    %53 = arith.addf %49, %52 : vector<16x128xf32>
    %cst_38 = arith.constant 0.000000e+00 : f32
    %54 = vector.broadcast %cst_38 : f32 to vector<16x128xf32>
    %55 = arith.cmpf ogt, %53, %54 : vector<16x128xf32>
    %cst_39 = arith.constant 0.00999999977 : f32
    %56 = vector.broadcast %cst_39 : f32 to vector<16x128xf32>
    %57 = arith.mulf %56, %53 : vector<16x128xf32>
    %58 = arith.select %55, %53, %57 : vector<16x128xi1>, vector<16x128xf32>
    %c0_40 = arith.constant 0 : index
    %c0_41 = arith.constant 0 : index
    %59 = vector.load %arg6[%c0_40, %c0_41] : memref<1x16xf32, #tpu.memory_space<vmem>>, vector<1x16xf32>
    %cst_42 = arith.constant dense<0.000000e+00> : vector<1x128xf32>
    %60 = tpu.matmul %59, %58, %cst_42 {dimension_numbers = #tpu.dot_dimension_numbers<[1], [0], [0], [1], [0, 0, 1, 1], [], []>} : vector<1x16xf32>, vector<16x128xf32>, vector<1x128xf32> -> vector<1x128xf32>
    %c0_43 = arith.constant 0 : index
    %c0_44 = arith.constant 0 : index
    %61 = vector.load %arg7[%c0_43, %c0_44] : memref<1x1xf32, #tpu.memory_space<vmem>>, vector<1x1xf32>
    %62 = vector.broadcast %61 : vector<1x1xf32> to vector<1x128xf32>
    %63 = arith.addf %60, %62 : vector<1x128xf32>
    %64 = arith.negf %63 : vector<1x128xf32>
    %65 = math.exp %64 : vector<1x128xf32>
    %cst_45 = arith.constant 1.000000e+00 : f32
    %66 = vector.broadcast %cst_45 : f32 to vector<1x128xf32>
    %67 = arith.addf %66, %65 : vector<1x128xf32>
    %68 = arith.divf %66, %67 : vector<1x128xf32>
    %c0_46 = arith.constant 0 : index
    %c0_47 = arith.constant 0 : index
    %69 = vector.load %arg8[%c0_46, %c0_47] : memref<1x128xf32, #tpu.memory_space<vmem>>, vector<1x128xf32>
    tpu.vector_store %arg8[%c0_46, %c0_47], %68 {strides = array<i32>} : memref<1x128xf32, #tpu.memory_space<vmem>>, vector<1x128xf32>,
    return
  }
  func.func @transform_0(%arg0: i32) -> (i32, i32) {
    %c0_i32 = arith.constant 0 : i32
    %c0_i32_0 = arith.constant 0 : i32
    return %c0_i32, %arg0 : i32, i32
  }
  func.func @transform_1(%arg0: i32) -> (i32, i32) {
    %c0_i32 = arith.constant 0 : i32
    %c0_i32_0 = arith.constant 0 : i32
    %c0_i32_1 = arith.constant 0 : i32
    return %c0_i32, %c0_i32_0 : i32, i32
  }
  func.func @transform_2(%arg0: i32) -> (i32, i32) {
    %c0_i32 = arith.constant 0 : i32
    %c0_i32_0 = arith.constant 0 : i32
    %c0_i32_1 = arith.constant 0 : i32
    return %c0_i32, %c0_i32_0 : i32, i32
  }
  func.func @transform_3(%arg0: i32) -> (i32, i32, i32) {
    %c0_i32 = arith.constant 0 : i32
    %c0_i32_0 = arith.constant 0 : i32
    %c0_i32_1 = arith.constant 0 : i32
    %c0_i32_2 = arith.constant 0 : i32
    return %c0_i32, %c0_i32_0, %c0_i32_1 : i32, i32, i32
  }
  func.func @transform_4(%arg0: i32) -> (i32, i32, i32) {
    %c0_i32 = arith.constant 0 : i32
    %c0_i32_0 = arith.constant 0 : i32
    %c0_i32_1 = arith.constant 0 : i32
    %c0_i32_2 = arith.constant 0 : i32
    return %c0_i32, %c0_i32_0, %c0_i32_1 : i32, i32, i32
  }
  func.func @transform_5(%arg0: i32) -> (i32, i32) {
    %c0_i32 = arith.constant 0 : i32
    %c0_i32_0 = arith.constant 0 : i32
    %c0_i32_1 = arith.constant 0 : i32
    return %c0_i32, %c0_i32_0 : i32, i32
  }
  func.func @transform_6(%arg0: i32) -> (i32, i32) {
    %c0_i32 = arith.constant 0 : i32
    %c0_i32_0 = arith.constant 0 : i32
    %c0_i32_1 = arith.constant 0 : i32
    return %c0_i32, %c0_i32_0 : i32, i32
  }
  func.func @transform_7(%arg0: i32) -> (i32, i32) {
    %c0_i32 = arith.constant 0 : i32
    %c0_i32_0 = arith.constant 0 : i32
    return %c0_i32, %arg0 : i32, i32
  }
}

</mosaic_0001>

<llo_original>
// kernel: net_forward.1
$region0: #{net_forward.1}
  #allocation0 [shape = 'u32[]', space=smem, size = 0x4, offset = 0x4, fixed_abs, tag = 'smem constant byte address 0x4 - core index']
  #allocation1 [shape = 'u32[72,128]{1,0:T(1,128)}', space=vmem, size = 0x9000, scoped, tag = 'internal scratch']
  #allocation2 [shape = 'f32[1,1]{1,0:T(1,128)S(1)}', space=vmem, size = 0x200, scoped, tag = 'scoped memory for net_forward.1']
  %s0 = inlined_call_operand.hbm [shape: f32[16,256], index: 0, kind: input, shape index: {}]
  %s1 = inlined_call_operand.vmem [shape: f32[16,16], index: 1, kind: input, shape index: {}]
  %s2 = inlined_call_operand.vmem [shape: f32[16,1], index: 2, kind: input, shape index: {}]
  %s3 = inlined_call_operand.vmem [shape: f32[4,16,16], index: 3, kind: input, shape index: {}]
  %s4 = inlined_call_operand.vmem [shape: f32[4,16,1], index: 4, kind: input, shape index: {}]
  %s5 = inlined_call_operand.vmem [shape: f32[1,16], index: 5, kind: input, shape index: {}]
  %s6 = inlined_call_operand.<no memory space> [shape: f32[1,1], index: 6, kind: input, shape index: {}]
  %s7 = inlined_call_operand.hbm [shape: f32[1,256], index: 7, kind: output, shape index: {}]
  %s8 = sld [smem:[#allocation0]]
  $region65: #{net_forward.1} parent=0
    _
  %s10 = ssub.s32 1, %s8
  %s11 = scalar_select 0, %s10, %s8
  %v12 = vstv %s6
  %13 = vst [vmem:[#allocation2] sm:$0x1] %v12
  $region1: #{net_forward.1} parent=0
    #allocation3 [shape = 'u8[16384]{0}', space=vmem, size = 0x4000, scoped, tag = 'input window, operand 0']
    #allocation4 [shape = 's32[2]{0}', space=sflag, size = 0x8, scoped, tag = 'scoped memory for net_forward.1']
    #allocation5 [shape = 's32[2]{0}', space=sflag, size = 0x8, scoped, tag = 'scoped memory for net_forward.1']
    #allocation6 [shape = 'u8[1024]{0}', space=vmem, size = 0x400, scoped, tag = 'output window, operand 0']
    %14 = vsyncpa [#allocation4], 0
    %s15 = scalar_lea.sflag [#allocation4], 1
    %16 = vsyncpa %s15, 0
    %17 = vsyncpa [#allocation5], 0
    %s18 = scalar_lea.sflag [#allocation5], 1
    %19 = vsyncpa %s18, 0
    loop: start=0, step=1, limit=4
    $region2: #{net_forward.1} parent=1 // loop_pre_header
      _
    $region3: #{net_forward.1} parent=1 // loop_header
      %s21 = sphi 0, %s25
      %p22 = scmp.ge.s32.totalorder %s21, 4
      %s31 = sphi 0, %s33
      %s34 = sphi 0, %s31
      %s35 = sphi 0, %s34
      %s51 = sphi 0, %s35
      %s55 = sphi 0, %s55
      %s57 = sphi 0, %s55
      %s58 = sphi 0, %s57
      %s72 = sphi 0, %s58
      %s76 = sphi 0, %s76
      %s78 = sphi 0, %s76
      %s79 = sphi 0, %s78
      %s93 = sphi 0, %s79
      %s97 = sphi 0, %s97
      %s99 = sphi 0, %s97
      %s100 = sphi 0, %s99
      %s114 = sphi 0, %s100
      %s118 = sphi 0, %s118
      %s120 = sphi 0, %s118
      %s121 = sphi 0, %s120
      %s135 = sphi 0, %s121
      %s139 = sphi 0, %s139
      %s141 = sphi 0, %s139
      %s142 = sphi 0, %s141
      %s156 = sphi 0, %s142
      %s160 = sphi 0, %s160
      %s162 = sphi 0, %s160
      %s163 = sphi 0, %s162
      %s177 = sphi 0, %s163
      %s183 = sphi 0, %s185
      %s186 = sphi 0, %s183
      %s187 = sphi 0, %s186
      %s203 = sphi 0, %s187
    $region4: #{net_forward.1} parent=1 // loop_header_branch
      %24 = sbr.rel (%p22) target = $region8
    $region5: #{net_forward.1} parent=1 // loop_body
      %s26 = ssub.s32 %s21, 1
      %s27 = ssub.s32 %s21, 2
      %s28 = sadd.s32 %s21, 1
      %s29 = ssub.s32 %s21, %s28
      %p30 = scmp.eq.s32.totalorder %s29, 0
      %s32 = sadd.s32 %s31, 1
      %s33 = scalar_select %p30, %s31, %s32
      %p36 = pneg %p30
      %p37 = scmp.eq.s32.totalorder %s21, 1
      %p38 = por %p36, %p37
      %p39 = scmp.ne.s32.totalorder %s31, %s34
      %p40 = scmp.eq.s32.totalorder %s21, 0
      %p41 = por %p39, %p40
      %p42 = scmp.ne.s32.totalorder %s31, %s34
      %p43 = scmp.eq.s32.totalorder %s26, 1
      %p44 = por %p42, %p43
      %p45 = scmp.ne.s32.totalorder %s34, %s35
      %p46 = scmp.eq.s32.totalorder %s26, 0
      %p47 = por %p45, %p46
      %p48 = scmp.ne.s32.totalorder %s34, %s35
      %p49 = scmp.eq.s32.totalorder %s27, 1
      %p50 = por %p48, %p49
      %p52 = scmp.ne.s32.totalorder %s35, %s51
      %p53 = scmp.eq.s32.totalorder %s27, 0
      %p54 = por %p52, %p53
      %s56 = sadd.s32 %s55, 1
      %p59 = scmp.eq.s32.totalorder %s21, 1
      %p60 = scmp.ne.s32.totalorder %s55, %s57
      %p61 = scmp.eq.s32.totalorder %s21, 0
      %p62 = por %p60, %p61
      %p63 = scmp.ne.s32.totalorder %s55, %s57
      %p64 = scmp.eq.s32.totalorder %s26, 1
      %p65 = por %p63, %p64
      %p66 = scmp.ne.s32.totalorder %s57, %s58
      %p67 = scmp.eq.s32.totalorder %s26, 0
      %p68 = por %p66, %p67
      %p69 = scmp.ne.s32.totalorder %s57, %s58
      %p70 = scmp.eq.s32.totalorder %s27, 1
      %p71 = por %p69, %p70
      %p73 = scmp.ne.s32.totalorder %s58, %s72
      %p74 = scmp.eq.s32.totalorder %s27, 0
      %p75 = por %p73, %p74
      %s77 = sadd.s32 %s76, 1
      %p80 = scmp.eq.s32.totalorder %s21, 1
      %p81 = scmp.ne.s32.totalorder %s76, %s78
      %p82 = scmp.eq.s32.totalorder %s21, 0
      %p83 = por %p81, %p82
      %p84 = scmp.ne.s32.totalorder %s76, %s78
      %p85 = scmp.eq.s32.totalorder %s26, 1
      %p86 = por %p84, %p85
      %p87 = scmp.ne.s32.totalorder %s78, %s79
      %p88 = scmp.eq.s32.totalorder %s26, 0
      %p89 = por %p87, %p88
      %p90 = scmp.ne.s32.totalorder %s78, %s79
      %p91 = scmp.eq.s32.totalorder %s27, 1
      %p92 = por %p90, %p91
      %p94 = scmp.ne.s32.totalorder %s79, %s93
      %p95 = scmp.eq.s32.totalorder %s27, 0
      %p96 = por %p94, %p95
      %s98 = sadd.s32 %s97, 1
      %p101 = scmp.eq.s32.totalorder %s21, 1
      %p102 = scmp.ne.s32.totalorder %s97, %s99
      %p103 = scmp.eq.s32.totalorder %s21, 0
      %p104 = por %p102, %p103
      %p105 = scmp.ne.s32.totalorder %s97, %s99
      %p106 = scmp.eq.s32.totalorder %s26, 1
      %p107 = por %p105, %p106
      %p108 = scmp.ne.s32.totalorder %s99, %s100
      %p109 = scmp.eq.s32.totalorder %s26, 0
      %p110 = por %p108, %p109
      %p111 = scmp.ne.s32.totalorder %s99, %s100
      %p112 = scmp.eq.s32.totalorder %s27, 1
      %p113 = por %p111, %p112
      %p115 = scmp.ne.s32.totalorder %s100, %s114
      %p116 = scmp.eq.s32.totalorder %s27, 0
      %p117 = por %p115, %p116
      %s119 = sadd.s32 %s118, 1
      %p122 = scmp.eq.s32.totalorder %s21, 1
      %p123 = scmp.ne.s32.totalorder %s118, %s120
      %p124 = scmp.eq.s32.totalorder %s21, 0
      %p125 = por %p123, %p124
      %p126 = scmp.ne.s32.totalorder %s118, %s120
      %p127 = scmp.eq.s32.totalorder %s26, 1
      %p128 = por %p126, %p127
      %p129 = scmp.ne.s32.totalorder %s120, %s121
      %p130 = scmp.eq.s32.totalorder %s26, 0
      %p131 = por %p129, %p130
      %p132 = scmp.ne.s32.totalorder %s120, %s121
      %p133 = scmp.eq.s32.totalorder %s27, 1
      %p134 = por %p132, %p133
      %p136 = scmp.ne.s32.totalorder %s121, %s135
      %p137 = scmp.eq.s32.totalorder %s27, 0
      %p138 = por %p136, %p137
      %s140 = sadd.s32 %s139, 1
      %p143 = scmp.eq.s32.totalorder %s21, 1
      %p144 = scmp.ne.s32.totalorder %s139, %s141
      %p145 = scmp.eq.s32.totalorder %s21, 0
      %p146 = por %p144, %p145
      %p147 = scmp.ne.s32.totalorder %s139, %s141
      %p148 = scmp.eq.s32.totalorder %s26, 1
      %p149 = por %p147, %p148
      %p150 = scmp.ne.s32.totalorder %s141, %s142
      %p151 = scmp.eq.s32.totalorder %s26, 0
      %p152 = por %p150, %p151
      %p153 = scmp.ne.s32.totalorder %s141, %s142
      %p154 = scmp.eq.s32.totalorder %s27, 1
      %p155 = por %p153, %p154
      %p157 = scmp.ne.s32.totalorder %s142, %s156
      %p158 = scmp.eq.s32.totalorder %s27, 0
      %p159 = por %p157, %p158
      %s161 = sadd.s32 %s160, 1
      %p164 = scmp.eq.s32.totalorder %s21, 1
      %p165 = scmp.ne.s32.totalorder %s160, %s162
      %p166 = scmp.eq.s32.totalorder %s21, 0
      %p167 = por %p165, %p166
      %p168 = scmp.ne.s32.totalorder %s160, %s162
      %p169 = scmp.eq.s32.totalorder %s26, 1
      %p170 = por %p168, %p169
      %p171 = scmp.ne.s32.totalorder %s162, %s163
      %p172 = scmp.eq.s32.totalorder %s26, 0
      %p173 = por %p171, %p172
      %p174 = scmp.ne.s32.totalorder %s162, %s163
      %p175 = scmp.eq.s32.totalorder %s27, 1
      %p176 = por %p174, %p175
      %p178 = scmp.ne.s32.totalorder %s163, %s177
      %p179 = scmp.eq.s32.totalorder %s27, 0
      %p180 = por %p178, %p179
      %s181 = ssub.s32 %s21, %s28
      %p182 = scmp.eq.s32.totalorder %s181, 0
      %s184 = sadd.s32 %s183, 1
      %s185 = scalar_select %p182, %s183, %s184
      %p188 = pneg %p182
      %p189 = scmp.eq.s32.totalorder %s21, 1
      %p190 = por %p188, %p189
      %p191 = scmp.ne.s32.totalorder %s183, %s186
      %p192 = scmp.eq.s32.totalorder %s21, 0
      %p193 = por %p191, %p192
      %p194 = scmp.ne.s32.totalorder %s183, %s186
      %p195 = scmp.eq.s32.totalorder %s26, 1
      %p196 = por %p194, %p195
      %p197 = scmp.ne.s32.totalorder %s186, %s187
      %p198 = scmp.eq.s32.totalorder %s26, 0
      %p199 = por %p197, %p198
      %p200 = scmp.ne.s32.totalorder %s186, %s187
      %p201 = scmp.eq.s32.totalorder %s27, 1
      %p202 = por %p200, %p201
      %p204 = scmp.ne.s32.totalorder %s187, %s203
      %p205 = scmp.eq.s32.totalorder %s27, 0
      %p206 = por %p204, %p205
      %p207 = scmp.le.s32.totalorder 1, %s21
      %p208 = scmp.lt.s32.totalorder %s21, 3
      %p209 = pnand %p207, %p208
      %p210 = pneg %p209
      // Predicated region
      $region9: #{net_forward.1} parent=5 // pred_check
        _
      $region10: #{net_forward.1} parent=5 // pred_check_branch
        %212 = sbr.rel (%p209) target = $region12
      $region11: #{net_forward.1} parent=5 // pred_region
        %s213 = ssub.s32 %s21, 1
        // Predicated region
        $region13: #{net_forward.1} parent=11 // pred_check
          %p214 = pneg %p68
        $region14: #{net_forward.1} parent=11 // pred_check_branch
          %216 = sbr.rel (%p214) target = $region16
        $region15: #{net_forward.1} parent=11 // pred_region
          _
        $region16: #{net_forward.1} parent=11 // pred_fallthru
          _
        // Predicated region
        $region17: #{net_forward.1} parent=11 // pred_check
          %p217 = pneg %p89
        $region18: #{net_forward.1} parent=11 // pred_check_branch
          %219 = sbr.rel (%p217) target = $region20
        $region19: #{net_forward.1} parent=11 // pred_region
          _
        $region20: #{net_forward.1} parent=11 // pred_fallthru
          _
        // Predicated region
        $region21: #{net_forward.1} parent=11 // pred_check
          %p220 = pneg %p110
        $region22: #{net_forward.1} parent=11 // pred_check_branch
          %222 = sbr.rel (%p220) target = $region24
        $region23: #{net_forward.1} parent=11 // pred_region
          _
        $region24: #{net_forward.1} parent=11 // pred_fallthru
          _
        // Predicated region
        $region25: #{net_forward.1} parent=11 // pred_check
          %p223 = pneg %p131
        $region26: #{net_forward.1} parent=11 // pred_check_branch
          %225 = sbr.rel (%p223) target = $region28
        $region27: #{net_forward.1} parent=11 // pred_region
          _
        $region28: #{net_forward.1} parent=11 // pred_fallthru
          _
        // Predicated region
        $region29: #{net_forward.1} parent=11 // pred_check
          %p226 = pneg %p152
        $region30: #{net_forward.1} parent=11 // pred_check_branch
          %228 = sbr.rel (%p226) target = $region32
        $region31: #{net_forward.1} parent=11 // pred_region
          _
        $region32: #{net_forward.1} parent=11 // pred_fallthru
          _
        // Predicated region
        $region33: #{net_forward.1} parent=11 // pred_check
          %p229 = pneg %p173
        $region34: #{net_forward.1} parent=11 // pred_check_branch
          %231 = sbr.rel (%p229) target = $region36
        $region35: #{net_forward.1} parent=11 // pred_region
          _
        $region36: #{net_forward.1} parent=11 // pred_fallthru
          _
      $region12: #{net_forward.1} parent=5 // pred_fallthru
        _
      %p232 = scmp.lt.s32.totalorder %s21, 2
      // Predicated region
      $region37: #{net_forward.1} parent=5 // pred_check
        %p233 = pneg %p232
      $region38: #{net_forward.1} parent=5 // pred_check_branch
        %235 = sbr.rel (%p233) target = $region40
      $region39: #{net_forward.1} parent=5 // pred_region
        // Predicated region
        $region41: #{net_forward.1} parent=39 // pred_check
          %p236 = pneg %p41
        $region42: #{net_forward.1} parent=39 // pred_check_branch
          %238 = sbr.rel (%p236) target = $region44
        $region43: #{net_forward.1} parent=39 // pred_region
          %s239 = sand.u32 %s31, 1
          %s240 = scalar_lea.sflag [#allocation4], %s239
          %s241 = sand.u32 %s31, 1
          %s242 = smul.addr %s241, 16
          %s243 = scalar_lea.vmem [#allocation3], %s242
          %245 = vsyncadd %s240, 0
          %s246 = smul.addr %s21, 8
          %s247 = scalar_lea.hbm %s0, %s246
          %s248 = sshll.u32 %s247, 4
          %s249 = int_to_ptr.hbm [resolvable:$true] %s248
          %s250 = sshll.u32 %s243, 4
          %s251 = int_to_ptr.vmem [resolvable:$true] %s250
          %256 = dma.hbm_to_vmem [thread:$0]  %s249, 256, %s251, %s240, 256, 128, 8
        $region44: #{net_forward.1} parent=39 // pred_fallthru
          _
      $region40: #{net_forward.1} parent=5 // pred_fallthru
        _
      %p257 = scmp.le.s32.totalorder 1, %s21
      %p258 = scmp.lt.s32.totalorder %s21, 3
      %p259 = pnand %p257, %p258
      %p260 = pneg %p259
      // Predicated region
      $region45: #{net_forward.1} parent=5 // pred_check
        _
      $region46: #{net_forward.1} parent=5 // pred_check_branch
        %262 = sbr.rel (%p259) target = $region48
      $region47: #{net_forward.1} parent=5 // pred_region
        %s263 = ssub.s32 %s21, 1
        %s264 = sand.u32 %s34, 1
        %s265 = scalar_lea.sflag [#allocation4], %s264
        %s266 = sand.u32 %s34, 1
        %s267 = smul.addr %s266, 16
        %s268 = scalar_lea.vmem [#allocation3], %s267
        // Predicated region
        $region49: #{net_forward.1} parent=47 // pred_check
          %p269 = pneg %p47
        $region50: #{net_forward.1} parent=47 // pred_check_branch
          %271 = sbr.rel (%p269) target = $region52
        $region51: #{net_forward.1} parent=47 // pred_region
          %273 = dma.done %s265, 256
        $region52: #{net_forward.1} parent=47 // pred_fallthru
          _
        %s274 = sand.u32 %s34, 1
        %s275 = scalar_lea.sflag [#allocation4], %s274
        %s276 = sand.u32 %s34, 1
        %s277 = smul.addr %s276, 16
        %s278 = scalar_lea.vmem [#allocation3], %s277
        %p279 = pneg %p47
        %p280 = pneg %p44
        %p281 = pneg %p68
        %p282 = pneg %p65
        %p283 = pneg %p89
        %p284 = pneg %p86
        %p285 = pneg %p110
        %p286 = pneg %p107
        %p287 = pneg %p131
        %p288 = pneg %p128
        %p289 = pneg %p152
        %p290 = pneg %p149
        %p291 = pneg %p173
        %p292 = pneg %p170
        %p293 = pneg %p199
        %p294 = pneg %p196
        %s295 = sand.u32 %s186, 1
        %s296 = scalar_lea.sflag [#allocation5], %s295
        %s297 = sand.u32 %s186, 1
        %s298 = scalar_lea.vmem [#allocation6], %s297
        %v299 = vld [vmem:[%s1] sm:$0xff]
        %v300 = vld [vmem:[%s1 + $0x8] sm:$0xff]
        %v301 = vld [vmem:[%s268] sm:$0xff]
        %v302 = vld [vmem:[%s268 + $0x8] sm:$0xff]
        %v303 = vld [vmem:[%s2] sm:$0xff]
        %v304 = vld [vmem:[%s2 + $0x8] sm:$0xff]
        %306 = vset.pattern.permute.xlu0 0
        %307 = vperm.xlu0 %306, %v303
        %v308 = vpop.permute.xlu0 %307
        %311 = vset.pattern.permute.xlu0 0
        %312 = vperm.xlu0 %311, %v304
        %v313 = vpop.permute.xlu0 %312
        %vm315 = vcmask 130048
        %v317 = vsel %vm315, %v299, 0
        %v320 = vsel %vm315, %v300, 0
        %322 = vmatpush.msra.mxu0 0.0
        %323 = vmatpush.msra.mxu0 0.0
        %324 = vmatpush.msra.mxu0 0.0
        %325 = vmatpush.msra.mxu0 0.0
        %326 = vmatpush.msra.mxu0 0.0
        %327 = vmatpush.msra.mxu0 0.0
        %328 = vmatpush.msra.mxu0 0.0
        %329 = vmatpush.msra.mxu0 0.0
        %330 = vmatpush.msra.mxu0 0.0
        %331 = vmatpush.msra.mxu0 0.0
        %332 = vmatpush.msra.mxu0 0.0
        %333 = vmatpush.msra.mxu0 0.0
        %334 = vmatpush.msra.mxu0 0.0
        %335 = vmatpush.msra.mxu0 0.0
        %336 = vmatpush.msra.mxu0 %v302
        %337 = vmatpush.msra.mxu0 %v301
        %338 = vmatmul.f32.gmra.mxu0 %v317
        %v339 = vpop.f32.mrf.mxu0
        %v340 = vadd.f32 %v308, %v339
        %341 = vmatmul.f32.gmra.mxu0 %v320
        %v342 = vpop.f32.mrf.mxu0
        %v343 = vadd.f32 %v313, %v342
        %344 = vdwg.mxu0
        %vm345 = vcmp.gt.f32.partialorder %v340, 0.0
        %vm346 = vcmp.gt.f32.partialorder %v343, 0.0
        %v347 = vmul.f32 %v340, 0.01
        %v348 = vmul.f32 %v343, 0.01
        %v349 = vsel %vm345, %v340, %v347
        %v350 = vsel %vm346, %v343, %v348
        %v351 = vld [vmem:[%s3] sm:$0xff]
        %v352 = vld [vmem:[%s3 + $0x8] sm:$0xff]
        %v353 = vld [vmem:[%s4] sm:$0xff]
        %v354 = vld [vmem:[%s4 + $0x8] sm:$0xff]
        %356 = vset.pattern.permute.xlu0 0
        %357 = vperm.xlu0 %356, %v353
        %v358 = vpop.permute.xlu0 %357
        %361 = vset.pattern.permute.xlu0 0
        %362 = vperm.xlu0 %361, %v354
        %v363 = vpop.permute.xlu0 %362
        %v366 = vsel %vm315, %v351, 0
        %v369 = vsel %vm315, %v352, 0
        %371 = vmatpush.msra.mxu0 0.0
        %372 = vmatpush.msra.mxu0 0.0
        %373 = vmatpush.msra.mxu0 0.0
        %374 = vmatpush.msra.mxu0 0.0
        %375 = vmatpush.msra.mxu0 0.0
        %376 = vmatpush.msra.mxu0 0.0
        %377 = vmatpush.msra.mxu0 0.0
        %378 = vmatpush.msra.mxu0 0.0
        %379 = vmatpush.msra.mxu0 0.0
        %380 = vmatpush.msra.mxu0 0.0
        %381 = vmatpush.msra.mxu0 0.0
        %382 = vmatpush.msra.mxu0 0.0
        %383 = vmatpush.msra.mxu0 0.0
        %384 = vmatpush.msra.mxu0 0.0
        %385 = vmatpush.msra.mxu0 %v350
        %386 = vmatpush.msra.mxu0 %v349
        %387 = vmatmul.f32.gmra.mxu0 %v366
        %v388 = vpop.f32.mrf.mxu0
        %v389 = vadd.f32 %v358, %v388
        %390 = vmatmul.f32.gmra.mxu0 %v369
        %v391 = vpop.f32.mrf.mxu0
        %v392 = vadd.f32 %v363, %v391
        %393 = vdwg.mxu0
        %vm394 = vcmp.gt.f32.partialorder %v389, 0.0
        %vm395 = vcmp.gt.f32.partialorder %v392, 0.0
        %v396 = vmul.f32 %v389, 0.01
        %v397 = vmul.f32 %v392, 0.01
        %v398 = vsel %vm394, %v389, %v396
        %v399 = vsel %vm395, %v392, %v397
        %s400 = scalar_lea.vmem %s3, 16
        %v401 = vld [vmem:[%s400] sm:$0xff]
        %v402 = vld [vmem:[%s400 + $0x8] sm:$0xff]
        %s403 = scalar_lea.vmem %s4, 16
        %v404 = vld [vmem:[%s403] sm:$0xff]
        %v405 = vld [vmem:[%s403 + $0x8] sm:$0xff]
        %407 = vset.pattern.permute.xlu0 0
        %408 = vperm.xlu0 %407, %v404
        %v409 = vpop.permute.xlu0 %408
        %412 = vset.pattern.permute.xlu0 0
        %413 = vperm.xlu0 %412, %v405
        %v414 = vpop.permute.xlu0 %413
        %v417 = vsel %vm315, %v401, 0
        %v420 = vsel %vm315, %v402, 0
        %422 = vmatpush.msra.mxu0 0.0
        %423 = vmatpush.msra.mxu0 0.0
        %424 = vmatpush.msra.mxu0 0.0
        %425 = vmatpush.msra.mxu0 0.0
        %426 = vmatpush.msra.mxu0 0.0
        %427 = vmatpush.msra.mxu0 0.0
        %428 = vmatpush.msra.mxu0 0.0
        %429 = vmatpush.msra.mxu0 0.0
        %430 = vmatpush.msra.mxu0 0.0
        %431 = vmatpush.msra.mxu0 0.0
        %432 = vmatpush.msra.mxu0 0.0
        %433 = vmatpush.msra.mxu0 0.0
        %434 = vmatpush.msra.mxu0 0.0
        %435 = vmatpush.msra.mxu0 0.0
        %436 = vmatpush.msra.mxu0 %v399
        %437 = vmatpush.msra.mxu0 %v398
        %438 = vmatmul.f32.gmra.mxu0 %v417
        %v439 = vpop.f32.mrf.mxu0
        %v440 = vadd.f32 %v409, %v439
        %441 = vmatmul.f32.gmra.mxu0 %v420
        %v442 = vpop.f32.mrf.mxu0
        %v443 = vadd.f32 %v414, %v442
        %444 = vdwg.mxu0
        %vm445 = vcmp.gt.f32.partialorder %v440, 0.0
        %vm446 = vcmp.gt.f32.partialorder %v443, 0.0
        %v447 = vmul.f32 %v440, 0.01
        %v448 = vmul.f32 %v443, 0.01
        %v449 = vsel %vm445, %v440, %v447
        %v450 = vsel %vm446, %v443, %v448
        %s451 = scalar_lea.vmem %s3, 32
        %v452 = vld [vmem:[%s451] sm:$0xff]
        %v453 = vld [vmem:[%s451 + $0x8] sm:$0xff]
        %s454 = scalar_lea.vmem %s4, 32
        %v455 = vld [vmem:[%s454] sm:$0xff]
        %v456 = vld [vmem:[%s454 + $0x8] sm:$0xff]
        %458 = vset.pattern.permute.xlu0 0
        %459 = vperm.xlu0 %458, %v455
        %v460 = vpop.permute.xlu0 %459
        %463 = vset.pattern.permute.xlu0 0
        %464 = vperm.xlu0 %463, %v456
        %v465 = vpop.permute.xlu0 %464
        %v468 = vsel %vm315, %v452, 0
        %v471 = vsel %vm315, %v453, 0
        %473 = vmatpush.msra.mxu0 0.0
        %474 = vmatpush.msra.mxu0 0.0
        %475 = vmatpush.msra.mxu0 0.0
        %476 = vmatpush.msra.mxu0 0.0
        %477 = vmatpush.msra.mxu0 0.0
        %478 = vmatpush.msra.mxu0 0.0
        %479 = vmatpush.msra.mxu0 0.0
        %480 = vmatpush.msra.mxu0 0.0
        %481 = vmatpush.msra.mxu0 0.0
        %482 = vmatpush.msra.mxu0 0.0
        %483 = vmatpush.msra.mxu0 0.0
        %484 = vmatpush.msra.mxu0 0.0
        %485 = vmatpush.msra.mxu0 0.0
        %486 = vmatpush.msra.mxu0 0.0
        %487 = vmatpush.msra.mxu0 %v450
        %488 = vmatpush.msra.mxu0 %v449
        %489 = vmatmul.f32.gmra.mxu0 %v468
        %v490 = vpop.f32.mrf.mxu0
        %v491 = vadd.f32 %v460, %v490
        %492 = vmatmul.f32.gmra.mxu0 %v471
        %v493 = vpop.f32.mrf.mxu0
        %v494 = vadd.f32 %v465, %v493
        %495 = vdwg.mxu0
        %vm496 = vcmp.gt.f32.partialorder %v491, 0.0
        %vm497 = vcmp.gt.f32.partialorder %v494, 0.0
        %v498 = vmul.f32 %v491, 0.01
        %v499 = vmul.f32 %v494, 0.01
        %v500 = vsel %vm496, %v491, %v498
        %v501 = vsel %vm497, %v494, %v499
        %s502 = scalar_lea.vmem %s3, 48
        %v503 = vld [vmem:[%s502] sm:$0xff]
        %v504 = vld [vmem:[%s502 + $0x8] sm:$0xff]
        %s505 = scalar_lea.vmem %s4, 48
        %v506 = vld [vmem:[%s505] sm:$0xff]
        %v507 = vld [vmem:[%s505 + $0x8] sm:$0xff]
        %509 = vset.pattern.permute.xlu0 0
        %510 = vperm.xlu0 %509, %v506
        %v511 = vpop.permute.xlu0 %510
        %514 = vset.pattern.permute.xlu0 0
        %515 = vperm.xlu0 %514, %v507
        %v516 = vpop.permute.xlu0 %515
        %v519 = vsel %vm315, %v503, 0
        %v522 = vsel %vm315, %v504, 0
        %524 = vmatpush.msra.mxu0 0.0
        %525 = vmatpush.msra.mxu0 0.0
        %526 = vmatpush.msra.mxu0 0.0
        %527 = vmatpush.msra.mxu0 0.0
        %528 = vmatpush.msra.mxu0 0.0
        %529 = vmatpush.msra.mxu0 0.0
        %530 = vmatpush.msra.mxu0 0.0
        %531 = vmatpush.msra.mxu0 0.0
        %532 = vmatpush.msra.mxu0 0.0
        %533 = vmatpush.msra.mxu0 0.0
        %534 = vmatpush.msra.mxu0 0.0
        %535 = vmatpush.msra.mxu0 0.0
        %536 = vmatpush.msra.mxu0 0.0
        %537 = vmatpush.msra.mxu0 0.0
        %538 = vmatpush.msra.mxu0 %v501
        %539 = vmatpush.msra.mxu0 %v500
        %540 = vmatmul.f32.gmra.mxu0 %v519
        %v541 = vpop.f32.mrf.mxu0
        %v542 = vadd.f32 %v511, %v541
        %543 = vmatmul.f32.gmra.mxu0 %v522
        %v544 = vpop.f32.mrf.mxu0
        %v545 = vadd.f32 %v516, %v544
        %546 = vdwg.mxu0
        %vm547 = vcmp.gt.f32.partialorder %v542, 0.0
        %vm548 = vcmp.gt.f32.partialorder %v545, 0.0
        %v549 = vmul.f32 %v542, 0.01
        %v550 = vmul.f32 %v545, 0.01
        %v551 = vsel %vm547, %v542, %v549
        %v552 = vsel %vm548, %v545, %v550
        %v553 = vld [vmem:[%s5] sm:$0x1]
        %v554 = vld [vmem:[#allocation2] sm:$0x1]
        %556 = vset.pattern.permute.xlu0 0
        %557 = vperm.xlu0 %556, %v554
        %v558 = vpop.permute.xlu0 %557
        %v560 = vperm.slane %v558, 0
        %v562 = vsel %vm315, %v553, 0
        %564 = vmatpush.msra.mxu0 0.0
        %565 = vmatpush.msra.mxu0 0.0
        %566 = vmatpush.msra.mxu0 0.0
        %567 = vmatpush.msra.mxu0 0.0
        %568 = vmatpush.msra.mxu0 0.0
        %569 = vmatpush.msra.mxu0 0.0
        %570 = vmatpush.msra.mxu0 0.0
        %571 = vmatpush.msra.mxu0 0.0
        %572 = vmatpush.msra.mxu0 0.0
        %573 = vmatpush.msra.mxu0 0.0
        %574 = vmatpush.msra.mxu0 0.0
        %575 = vmatpush.msra.mxu0 0.0
        %576 = vmatpush.msra.mxu0 0.0
        %577 = vmatpush.msra.mxu0 0.0
        %578 = vmatpush.msra.mxu0 %v552
        %579 = vmatpush.msra.mxu0 %v551
        %580 = vmatmul.f32.gmra.mxu0 %v562
        %v581 = vpop.f32.mrf.mxu0
        %v582 = vadd.f32 %v560, %v581
        %583 = vdwg.mxu0
        %v584 = vxor.u32 %v582, 2147483648
        %v585 = vmul.f32 %v584, 1.442695
        %v586 = vpow.pop %v585
        %v587 = vadd.f32 %v586, 1.0
        %v588 = vrcp.pop %v587
        %v589 = vmul.f32 %v587, %v588
        %v590 = vsub.f32 1.0, %v589
        %v591 = vmul.f32 %v588, %v590
        %v592 = vadd.f32 %v588, %v591
        %vm593 = vweird.f32 %v587
        %vm594 = vweird.f32 %v588
        %vm595 = vmor %vm593, %vm594
        %v596 = vsel %vm595, %v588, %v592
        %v597 = vand.u32 2147483647, %v587
        %vm598 = vcmp.eq.f32.partialorder %v597, 8.507059e+37
        %v599 = vand.u32 %v587, 2147483648
        %v600 = vor.u32 1.1754944e-38, %v599
        %v601 = vsel %vm598, %v600, %v596
        %v602 = vmul.f32 1.0, %v601
        %603 = vst [vmem:[%s298] sm:$0x1] %v602
        %s604 = sand.u32 %s186, 1
        %s605 = scalar_lea.sflag [#allocation5], %s604
        %s606 = sand.u32 %s186, 1
        %s607 = scalar_lea.vmem [#allocation6], %s606
        // Predicated region
        $region53: #{net_forward.1} parent=47 // pred_check
          %p608 = pneg %p196
        $region54: #{net_forward.1} parent=47 // pred_check_branch
          %610 = sbr.rel (%p608) target = $region56
        $region55: #{net_forward.1} parent=47 // pred_region
          %612 = vsyncadd %s605, 0
          %s613 = scalar_lea.hbm %s7, %s26
          %s615 = sshll.u32 %s607, 4
          %s616 = int_to_ptr.vmem [resolvable:$true] %s615
          %s617 = sshll.u32 %s613, 4
          %s618 = int_to_ptr.hbm [resolvable:$true] %s617
          %620 = dma.vmem_to_hbm [thread:$0]  %s616, 16, %s618, %s605
        $region56: #{net_forward.1} parent=47 // pred_fallthru
          _
      $region48: #{net_forward.1} parent=5 // pred_fallthru
        _
      %p621 = scmp.le.s32.totalorder 2, %s21
      // Predicated region
      $region57: #{net_forward.1} parent=5 // pred_check
        %p622 = pneg %p621
      $region58: #{net_forward.1} parent=5 // pred_check_branch
        %624 = sbr.rel (%p622) target = $region60
      $region59: #{net_forward.1} parent=5 // pred_region
        %s625 = ssub.s32 %s21, 2
        // Predicated region
        $region61: #{net_forward.1} parent=59 // pred_check
          %p626 = pneg %p202
        $region62: #{net_forward.1} parent=59 // pred_check_branch
          %628 = sbr.rel (%p626) target = $region64
        $region63: #{net_forward.1} parent=59 // pred_region
          %s629 = sand.u32 %s187, 1
          %s630 = scalar_lea.sflag [#allocation5], %s629
          %s631 = sand.u32 %s187, 1
          %s632 = scalar_lea.vmem [#allocation6], %s631
          %634 = dma.done %s630, 16
        $region64: #{net_forward.1} parent=59 // pred_fallthru
          _
      $region60: #{net_forward.1} parent=5 // pred_fallthru
        _
    $region6: #{net_forward.1} parent=1 // loop_footer
      %s25 = sadd.s32 1, %s21
    $region7: #{net_forward.1} parent=1 // loop_footer_branch
      %20 = sbr.rel target = $region3
    $region8: #{net_forward.1} parent=1 // loop_exit
      _
    %635 = vsyncpa [#allocation4], 1
    %s636 = scalar_lea.sflag [#allocation4], 1
    %637 = vsyncpa %s636, 1
    %638 = vsyncpa [#allocation5], 1
    %s639 = scalar_lea.sflag [#allocation5], 1
    %640 = vsyncpa %s639, 1

</llo_original>
